<compile_context>
chip_gen: v7x
topology: tpu7x:2x2x1
jax: 0.10.0
libtpu: 0.0.40
codegen_flags: <defaults>
</compile_context>

<pallas_src>
import jax
import jax.numpy as jnp
from jax import lax
from jax.experimental import pallas as pl
from jax.experimental.pallas import tpu as pltpu

_LANES = 128
_SUBLANES = 8


def _round_up(a, m):
    return (a + m - 1) // m * m


def _cdiv(a, b):
    return (a + b - 1) // b


def _linear_pairwise_kernel(w_ref, b_ref, x_ref, o_ref):
    # w_ref: (4,) SMEM  = [W00, W01, W10, W11]  (PyTorch (out, in) layout, flattened)
    # b_ref: (2,) SMEM  = [b0, b1]
    # x_ref: (tr, 128) VMEM tile of the flat (B*2,) buffer:
    #        even lanes hold x[:, 0], odd lanes hold x[:, 1]
    # o_ref: (tr, 128) VMEM tile, same interleaved layout for y.
    v = x_ref[...]                                          # (tr, 128)

    lane = lax.broadcasted_iota(jnp.int32, (1, _LANES), 1)  # (1, 128)
    even = (lane % 2) == 0                                  # even lane <=> channel 0

    # Partner within each (x0, x1) lane pair: partner[:, j] = v[:, j ^ 1].
    # Wrap-around lanes (0 and 127) land on the branch that is not selected.
    nxt = pltpu.roll(v, shift=_LANES - 1, axis=1)           # nxt[:, j] = v[:, j + 1]
    prv = pltpu.roll(v, shift=1, axis=1)                    # prv[:, j] = v[:, j - 1]
    partner = jnp.where(even, nxt, prv)

    w00 = w_ref[0]
    w01 = w_ref[1]
    w10 = w_ref[2]
    w11 = w_ref[3]
    b0 = b_ref[0]
    b1 = b_ref[1]

    # Per-lane coefficients (broadcast (1,128) over the tile):
    #   even lane (self=x0, partner=x1): y0 = x0*W00 + x1*W01 + b0
    #   odd  lane (self=x1, partner=x0): y1 = x0*W10 + x1*W11 + b1
    c_self = jnp.where(even, w00, w11)
    c_part = jnp.where(even, w01, w10)
    c_bias = jnp.where(even, b0, b1)

    o_ref[...] = (v * c_self + partner * c_part + c_bias).astype(o_ref.dtype)
    # TODO(synk): lowmem_dropout(p=0.5) is computed but discarded in the
    # PyTorch forward (it returns v1), so it is intentionally omitted.


def linear_forward(x, w, b, *, tile_rows=4096, min_pallas_batch=16384):
    """y = x @ w.T + b for Linear(2, 2).  x: (..., 2); w: (2, 2); b: (2,)."""
    orig_shape = x.shape
    assert orig_shape[-1] == 2 and w.shape == (2, 2) and b.shape == (2,)
    x2 = x.reshape(-1, 2)                       # free: contiguous leading dims
    B = x2.shape[0]

    if B < min_pallas_batch:
        # Tiny batch: kernel launch + layout plumbing would dominate; let XLA fuse it.
        y = x2 @ w.T.astype(x2.dtype) + b.astype(x2.dtype)
        return y.reshape(orig_shape[:-1] + (2,))

    n = 2 * B                                   # flat element count (x0/x1 interleaved)
    rows_needed = _cdiv(n, _LANES)
    rows_min = _round_up(rows_needed, _SUBLANES)

    # Tile selection: >= 2 grid steps when possible (v7x dual-TC sharding of the
    # "parallel" axis), capped at tile_rows (VMEM budget / >=1 MiB HBM per step).
    if rows_min >= 2 * _SUBLANES:
        tr = min(_round_up(tile_rows, _SUBLANES),
                 _round_up(_cdiv(rows_needed, 2), _SUBLANES))
    else:
        tr = rows_min
    tr = max(tr, _SUBLANES)
    num_tiles = _cdiv(rows_needed, tr)
    padded_rows = num_tiles * tr
    padded_n = padded_rows * _LANES

    # Free reshape of the contiguous (B, 2) buffer -> (rows, 128); no HBM transpose.
    flat = x2.reshape(-1)
    if padded_n != n:
        flat = jnp.pad(flat, (0, padded_n - n))
    x2d = flat.reshape(padded_rows, _LANES)

    w_flat = w.reshape(-1).astype(jnp.float32)  # -> SMEM scalars
    b_f32 = b.astype(jnp.float32)               # -> SMEM scalars

    y2d = pl.pallas_call(
        _linear_pairwise_kernel,
        out_shape=jax.ShapeDtypeStruct((padded_rows, _LANES), x2.dtype),
        grid_spec=pl.GridSpec(
            grid=(num_tiles,),
            in_specs=[
                pl.BlockSpec(memory_space=pltpu.MemorySpace.SMEM),   # weights (4,)
                pl.BlockSpec(memory_space=pltpu.MemorySpace.SMEM),   # bias    (2,)
                pl.BlockSpec((tr, _LANES), lambda i: (i, 0)),        # x tiles
            ],
            out_specs=pl.BlockSpec((tr, _LANES), lambda i: (i, 0)),
        ),
        compiler_params=pltpu.CompilerParams(
            dimension_semantics=("parallel",),
            vmem_limit_bytes=32 * 1024 * 1024,
        ),
    )(w_flat, b_f32, x2d)

    y_flat = y2d.reshape(-1)
    if padded_n != n:
        y_flat = y_flat[:n]
    return y_flat.reshape(orig_shape[:-1] + (2,))


if __name__ == "__main__":
    key = jax.random.PRNGKey(0)
    kx, kw, kb, kx2 = jax.random.split(key, 4)

    B, Cin, Cout = 8, 2, 2
    x = jax.random.normal(kx, (B, Cin), dtype=jnp.float32)
    # Deterministic "Linear(2, 2)" parameters (PyTorch layout: (out, in)).
    w = jax.random.uniform(kw, (Cout, Cin), minval=-0.5, maxval=0.5,
                           dtype=jnp.float32)
    b = jax.random.uniform(kb, (Cout,), minval=-0.5, maxval=0.5,
                           dtype=jnp.float32)

    # Small case (single block) -- force the Pallas path so the kernel runs.
    out = linear_forward(x, w, b, min_pallas_batch=0)
    jax.block_until_ready(out)
    ref = x @ w.T + b
    assert out.shape == (B, Cout)
    assert jnp.allclose(out, ref, atol=1e-5, rtol=1e-5), "mismatch (small B)"

    # Larger, non-multiple-of-128 batch: exercises padding + multiple parallel
    # grid steps (small tile_rows here just to force >1 tile at test size).
    B2 = 3000
    x2 = jax.random.normal(kx2, (B2, Cin), dtype=jnp.float32)
    out2 = linear_forward(x2, w, b, min_pallas_batch=0, tile_rows=16)
    jax.block_until_ready(out2)
    ref2 = x2 @ w.T + b
    assert jnp.allclose(out2, ref2, atol=1e-5, rtol=1e-5), "mismatch (tiled B)"

    # Tiny-batch bypass path (XLA) also matches.
    out3 = linear_forward(x, w, b)          # default threshold -> no Pallas
    jax.block_until_ready(out3)
    assert jnp.allclose(out3, ref, atol=1e-5, rtol=1e-5), "mismatch (bypass)"

    print("KERNEL_OK")
</pallas_src>

<mosaic_0001>
module attributes {stable_mosaic.version = 11 : i64} {
  func.func @_linear_pairwise_kernel(%arg0: i32, %arg1: memref<4xf32, #tpu.memory_space<smem>>, %arg2: memref<2xf32, #tpu.memory_space<smem>>, %arg3: memref<8x128xf32, #tpu.memory_space<vmem>>, %arg4: memref<8x128xf32, #tpu.memory_space<vmem>>) attributes {dimension_semantics = [#tpu.dimension_semantics<parallel>], iteration_bounds = array<i64: 1>, scalar_prefetch = 0 : i64, scratch_operands = 0 : i64, tpu.core_type = #tpu.core_type<tc>, window_params = [{transform_indices = @transform_0, window_bounds = array<i64: 4>}, {transform_indices = @transform_1, window_bounds = array<i64: 2>}, {transform_indices = @transform_2, window_bounds = array<i64: 8, 128>}, {transform_indices = @transform_3, window_bounds = array<i64: 8, 128>}]} {
    %c0 = arith.constant 0 : index
    %c0_0 = arith.constant 0 : index
    %0 = vector.load %arg3[%c0, %c0_0] : memref<8x128xf32, #tpu.memory_space<vmem>>, vector<8x128xf32>
    %1 = tpu.iota {dimensions = array<i32: 1>} : vector<1x128xi32>
    %c2_i32 = arith.constant 2 : i32
    %c0_i32 = arith.constant 0 : i32
    %2 = arith.cmpi eq, %c2_i32, %c0_i32 : i32
    %c1_i32 = arith.constant 1 : i32
    %3 = arith.select %2, %c1_i32, %c2_i32 : i32
    %4 = vector.broadcast %3 : i32 to vector<1x128xi32>
    %5 = arith.remsi %1, %4 : vector<1x128xi32>
    %c0_i32_1 = arith.constant 0 : i32
    %6 = vector.broadcast %c0_i32_1 : i32 to vector<1x128xi32>
    %7 = arith.cmpi ne, %5, %6 : vector<1x128xi32>
    %c0_i32_2 = arith.constant 0 : i32
    %8 = vector.broadcast %c0_i32_2 : i32 to vector<1x128xi32>
    %9 = arith.cmpi slt, %5, %8 : vector<1x128xi32>
    %c0_i32_3 = arith.constant 0 : i32
    %10 = arith.cmpi slt, %3, %c0_i32_3 : i32
    %11 = vector.broadcast %10 : i1 to vector<1x128xi1>
    %12 = vector.broadcast %11 : vector<1x128xi1> to vector<1x128xi1>
    %13 = arith.xori %9, %12 : vector<1x128xi1>
    %14 = arith.andi %13, %7 : vector<1x128xi1>
    %15 = vector.broadcast %3 : i32 to vector<1x128xi32>
    %16 = arith.addi %5, %15 : vector<1x128xi32>
    %17 = arith.select %14, %16, %5 : vector<1x128xi1>, vector<1x128xi32>
    %c0_i32_4 = arith.constant 0 : i32
    %18 = vector.broadcast %c0_i32_4 : i32 to vector<1x128xi32>
    %19 = arith.cmpi eq, %17, %18 : vector<1x128xi32>
    %c127_i32 = arith.constant 127 : i32
    %20 = tpu.dynamic_rotate %0 by %c127_i32 dim 1 : vector<8x128xf32>, i32 -> vector<8x128xf32>
    %c1_i32_5 = arith.constant 1 : i32
    %21 = tpu.dynamic_rotate %0 by %c1_i32_5 dim 1 : vector<8x128xf32>, i32 -> vector<8x128xf32>
    %22 = vector.shape_cast %19 : vector<1x128xi1> to vector<1x128xi1>
    %23 = vector.broadcast %22 : vector<1x128xi1> to vector<8x128xi1>
    %24 = arith.select %23, %20, %21 : vector<8x128xi1>, vector<8x128xf32>
    %c0_6 = arith.constant 0 : index
    %25 = memref.load %arg1[%c0_6] : memref<4xf32, #tpu.memory_space<smem>>
    %c1 = arith.constant 1 : index
    %26 = memref.load %arg1[%c1] : memref<4xf32, #tpu.memory_space<smem>>
    %c2 = arith.constant 2 : index
    %27 = memref.load %arg1[%c2] : memref<4xf32, #tpu.memory_space<smem>>
    %c3 = arith.constant 3 : index
    %28 = memref.load %arg1[%c3] : memref<4xf32, #tpu.memory_space<smem>>
    %c0_7 = arith.constant 0 : index
    %29 = memref.load %arg2[%c0_7] : memref<2xf32, #tpu.memory_space<smem>>
    %c1_8 = arith.constant 1 : index
    %30 = memref.load %arg2[%c1_8] : memref<2xf32, #tpu.memory_space<smem>>
    %31 = vector.broadcast %25 : f32 to vector<1x128xf32>
    %32 = vector.broadcast %28 : f32 to vector<1x128xf32>
    %33 = arith.select %19, %31, %32 : vector<1x128xi1>, vector<1x128xf32>
    %34 = vector.broadcast %26 : f32 to vector<1x128xf32>
    %35 = vector.broadcast %27 : f32 to vector<1x128xf32>
    %36 = arith.select %19, %34, %35 : vector<1x128xi1>, vector<1x128xf32>
    %37 = vector.broadcast %29 : f32 to vector<1x128xf32>
    %38 = vector.broadcast %30 : f32 to vector<1x128xf32>
    %39 = arith.select %19, %37, %38 : vector<1x128xi1>, vector<1x128xf32>
    %40 = vector.broadcast %33 : vector<1x128xf32> to vector<8x128xf32>
    %41 = arith.mulf %0, %40 : vector<8x128xf32>
    %42 = vector.broadcast %36 : vector<1x128xf32> to vector<8x128xf32>
    %43 = arith.mulf %24, %42 : vector<8x128xf32>
    %44 = arith.addf %41, %43 : vector<8x128xf32>
    %45 = vector.broadcast %39 : vector<1x128xf32> to vector<8x128xf32>
    %46 = arith.addf %44, %45 : vector<8x128xf32>
    %c0_9 = arith.constant 0 : index
    %c0_10 = arith.constant 0 : index
    %47 = vector.load %arg4[%c0_9, %c0_10] : memref<8x128xf32, #tpu.memory_space<vmem>>, vector<8x128xf32>
    tpu.vector_store %arg4[%c0_9, %c0_10], %46 {strides = array<i32>} : memref<8x128xf32, #tpu.memory_space<vmem>>, vector<8x128xf32>,
    return
  }
  func.func @transform_0(%arg0: i32) -> i32 {
    %c0_i32 = arith.constant 0 : i32
    %c0_i32_0 = arith.constant 0 : i32
    return %c0_i32 : i32
  }
  func.func @transform_1(%arg0: i32) -> i32 {
    %c0_i32 = arith.constant 0 : i32
    %c0_i32_0 = arith.constant 0 : i32
    return %c0_i32 : i32
  }
  func.func @transform_2(%arg0: i32) -> (i32, i32) {
    %c0_i32 = arith.constant 0 : i32
    %c0_i32_0 = arith.constant 0 : i32
    return %arg0, %c0_i32 : i32, i32
  }
  func.func @transform_3(%arg0: i32) -> (i32, i32) {
    %c0_i32 = arith.constant 0 : i32
    %c0_i32_0 = arith.constant 0 : i32
    return %arg0, %c0_i32 : i32, i32
  }
}

</mosaic_0001>

<llo_original>
// kernel: tpu_custom_call.1
$region0: #{tpu_custom_call.1}
  #allocation0 [shape = 'u32[]', space=smem, size = 0x4, offset = 0x4, fixed_abs, tag = 'smem constant byte address 0x4 - core index']
  #allocation1 [shape = 'u32[144,128]{1,0:T(1,128)}', space=vmem, size = 0x12000, scoped, tag = 'internal scratch']
  %s0 = inlined_call_operand.hbm [shape: f32[4], index: 0, kind: input, shape index: {}]
  %s1 = inlined_call_operand.vmem [shape: f32[2], index: 1, kind: input, shape index: {}]
  %s2 = inlined_call_operand.hbm [shape: f32[8,128], index: 2, kind: input, shape index: {}]
  %s3 = inlined_call_operand.hbm [shape: f32[8,128], index: 3, kind: output, shape index: {}]
  %s4 = sld [smem:[#allocation0]]
  $region34: #{tpu_custom_call.1} parent=0
    _
  %s6 = ssub.s32 1, %s4
  %s7 = scalar_select 0, %s6, %s4
  $region1: #{tpu_custom_call.1} parent=0
    #allocation2 [shape = 'u8[512]{0}', space=smem, size = 0x200, scoped, tag = 'input window, operand 0, single buffered']
    #allocation3 [shape = 's32[1]{0}', space=sflag, size = 0x4, scoped, tag = 'scoped memory for tpu_custom_call.1']
    #allocation4 [shape = 's32[1]{0}', space=sflag, size = 0x4, scoped, tag = 'scoped memory for tpu_custom_call.1']
    #allocation5 [shape = 's32[1]{0}', space=sflag, size = 0x4, scoped, tag = 'scoped memory for tpu_custom_call.1']
    #allocation6 [shape = 's32[1]{0}', space=sflag, size = 0x4, scoped, tag = 'scoped memory for tpu_custom_call.1']
    #allocation7 [shape = 'u8[512]{0}', space=smem, size = 0x200, scoped, tag = 'input window, operand 1, single buffered']
    #allocation8 [shape = 'u8[4096]{0}', space=vmem, size = 0x1000, scoped, tag = 'input window, operand 2, single buffered']
    #allocation9 [shape = 'u8[4096]{0}', space=vmem, size = 0x1000, scoped, tag = 'output window, operand 0, single buffered']
    %8 = vsyncpa [#allocation5], 0
    %9 = vsyncpa [#allocation6], 0
    %10 = vsyncpa [#allocation3], 0
    %11 = vsyncpa [#allocation4], 0
    // Predicated region
    $region2: #{tpu_custom_call.1} parent=1 // pred_check
      _
    $region3: #{tpu_custom_call.1} parent=1 // pred_check_branch
      %13 = sbr.rel (0) target = $region5
    $region4: #{tpu_custom_call.1} parent=1 // pred_region
      %s15 = ssub.s32 16, 16
      %16 = vsyncadd [#allocation5], %s15
      %19 = dma.hbm_to_smem %s0, 16, [#allocation2], [#allocation5]
    $region5: #{tpu_custom_call.1} parent=1 // pred_fallthru
      _
    // Predicated region
    $region6: #{tpu_custom_call.1} parent=1 // pred_check
      _
    $region7: #{tpu_custom_call.1} parent=1 // pred_check_branch
      %21 = sbr.rel (0) target = $region9
    $region8: #{tpu_custom_call.1} parent=1 // pred_region
      %s23 = ssub.s32 16, 16
      %24 = vsyncadd [#allocation6], %s23
      %s26 = sshll.u32 %s1, 4
      %s27 = int_to_ptr.vmem [resolvable:$true] %s26
      %29 = dma.vmem_to_smem %s27, 16, [#allocation7], [#allocation6]
    $region9: #{tpu_custom_call.1} parent=1 // pred_fallthru
      _
    // Predicated region
    $region10: #{tpu_custom_call.1} parent=1 // pred_check
      _
    $region11: #{tpu_custom_call.1} parent=1 // pred_check_branch
      %31 = sbr.rel (0) target = $region13
    $region12: #{tpu_custom_call.1} parent=1 // pred_region
      %s33 = ssub.s32 128, 128
      %34 = vsyncadd [#allocation3], %s33
      %s36 = sshll.u32 [#allocation8], 4
      %s37 = int_to_ptr.vmem [resolvable:$true] %s36
      %39 = dma.hbm_to_vmem [thread:$0]  %s2, 128, %s37, [#allocation3]
    $region13: #{tpu_custom_call.1} parent=1 // pred_fallthru
      _
    // Predicated region
    $region14: #{tpu_custom_call.1} parent=1 // pred_check
      _
    $region15: #{tpu_custom_call.1} parent=1 // pred_check_branch
      %41 = sbr.rel (0) target = $region17
    $region16: #{tpu_custom_call.1} parent=1 // pred_region
      %42 = dma.done [#allocation5], 16
    $region17: #{tpu_custom_call.1} parent=1 // pred_fallthru
      _
    // Predicated region
    $region18: #{tpu_custom_call.1} parent=1 // pred_check
      _
    $region19: #{tpu_custom_call.1} parent=1 // pred_check_branch
      %44 = sbr.rel (0) target = $region21
    $region20: #{tpu_custom_call.1} parent=1 // pred_region
      %45 = dma.done [#allocation6], 16
    $region21: #{tpu_custom_call.1} parent=1 // pred_fallthru
      _
    // Predicated region
    $region22: #{tpu_custom_call.1} parent=1 // pred_check
      _
    $region23: #{tpu_custom_call.1} parent=1 // pred_check_branch
      %47 = sbr.rel (0) target = $region25
    $region24: #{tpu_custom_call.1} parent=1 // pred_region
      %48 = dma.done [#allocation3], 128
    $region25: #{tpu_custom_call.1} parent=1 // pred_fallthru
      _
    %49 = sfence
    %v50 = vld [vmem:[#allocation8] sm:$0xff]
    %v51 = vlaneseq
    %v52 = vand.u32 %v51, 127
    %vm53 = vcmp.lt.s32.totalorder %v52, 0
    %v54 = vsub.s32 0, %v52
    %v55 = vsel %vm53, %v54, %v52
    %v56 = vshrl.u32 %v55, 1
    %v57 = vand.u32 %v55, 1
    %v58 = vsub.s32 0, %v57
    %v59 = vsel %vm53, %v58, %v57
    %vm60 = vcmp.ne.s32.totalorder %v59, 0
    %vm61 = vcmp.lt.s32.totalorder %v59, 0
    %vm62 = vmand %vm61, %vm60
    %v63 = vadd.s32 %v59, 2
    %v64 = vsel %vm62, %v63, %v59
    %vm65 = vcmp.eq.s32.totalorder %v64, 0
    %66 = vrot.lane.b32.xlu0 %v50, 127
    %v67 = vpop.permute.xlu0 %66
    %68 = vrot.lane.b32.xlu0 %v50, 1
    %v69 = vpop.permute.xlu0 %68
    %v70 = vsel %vm65, 1, 0
    %vm71 = vcmp.eq.s32.totalorder %v70, 1
    %v72 = vsel %vm71, %v67, %v69
    %s73 = sld [smem:[#allocation2]]
    %s74 = sld [smem:[#allocation2 + $0x1]]
    %s75 = sld [smem:[#allocation2 + $0x2]]
    %s76 = sld [smem:[#allocation2 + $0x3]]
    %s77 = sld [smem:[#allocation7]]
    %s78 = sld [smem:[#allocation7 + $0x1]]
    %v79 = vstv %s73
    %v80 = vstv %s76
    %v81 = vsel %vm65, %v79, %v80
    %v82 = vstv %s74
    %v83 = vstv %s75
    %v84 = vsel %vm65, %v82, %v83
    %v85 = vstv %s77
    %v86 = vstv %s78
    %v87 = vsel %vm65, %v85, %v86
    %v88 = vmul.f32 %v50, %v81
    %v89 = vmul.f32 %v72, %v84
    %v90 = vadd.f32 %v88, %v89
    %v91 = vadd.f32 %v90, %v87
    %92 = vst [vmem:[#allocation9] sm:$0xff] %v91
    // Predicated region
    $region26: #{tpu_custom_call.1} parent=1 // pred_check
      _
    $region27: #{tpu_custom_call.1} parent=1 // pred_check_branch
      %94 = sbr.rel (0) target = $region29
    $region28: #{tpu_custom_call.1} parent=1 // pred_region
      %s96 = ssub.s32 128, 128
      %97 = vsyncadd [#allocation4], %s96
      %s99 = sshll.u32 [#allocation9], 4
      %s100 = int_to_ptr.vmem [resolvable:$true] %s99
      %102 = dma.vmem_to_hbm [thread:$0]  %s100, 128, %s3, [#allocation4]
    $region29: #{tpu_custom_call.1} parent=1 // pred_fallthru
      _
    // Predicated region
    $region30: #{tpu_custom_call.1} parent=1 // pred_check
      _
    $region31: #{tpu_custom_call.1} parent=1 // pred_check_branch
      %104 = sbr.rel (0) target = $region33
    $region32: #{tpu_custom_call.1} parent=1 // pred_region
      %105 = dma.done [#allocation4], 128
    $region33: #{tpu_custom_call.1} parent=1 // pred_fallthru
      _
    %106 = vsyncpa [#allocation3], 1
    %107 = vsyncpa [#allocation4], 1
    %108 = vsyncpa [#allocation5], 1
    %109 = vsyncpa [#allocation6], 1

</llo_original>
